<compile_context>
chip_gen: v7x
topology: tpu7x:2x2x1
jax: 0.10.0
libtpu: 0.0.40
codegen_flags: <defaults>
</compile_context>

<pallas_src>
import functools

import jax
import jax.numpy as jnp
from jax.experimental import pallas as pl
from jax.experimental.pallas import tpu as pltpu


# ---------------------------------------------------------------------------
# Config (consistent with the PyTorch module's __init__)
# ---------------------------------------------------------------------------
CONFIG = dict(
    kernel_size=(2, 3, 4),
    output_channels=8,
    class_num=4,
    linear_one=16,
    dropout=0.5,          # identity at inference
    vocab_size=50,
    vector_size=32,       # embedding dim
)
BATCH = 2
SEQ_LEN = 16

LANE = 128                # lane width (pad every feature-ish dim to this)
BT = 8                    # batch tile (sublane-aligned)


# ---------------------------------------------------------------------------
# Pallas kernel
# ---------------------------------------------------------------------------
def _news_kernel(ks, C,
                 emb_ref, wall_ref, bias_ref, fc1w_ref, fc2w_ref,
                 out_ref):
    BTl, L, Ep = emb_ref.shape                       # (8, 16, 128)
    Hpad = fc1w_ref.shape[1]                         # 128

    # ---- one fused MXU pass for every tap of every conv kernel -------------
    x2d = emb_ref[...].reshape(BTl * L, Ep)          # free reshape (sublane merge)
    y = jnp.dot(x2d, wall_ref[...],
                preferred_element_type=jnp.float32)  # (BT*L, 128) single MXU tile
    y = y.reshape(BTl, L, wall_ref.shape[1])         # (BT, L, 128)

    # ---- per kernel size: shift-add matmul output, pool, bias, ReLU, fc1 ---
    h_acc = jnp.zeros((BTl, Hpad), jnp.float32)
    col = 0
    for kk, k in enumerate(ks):
        out_len = L - k + 1
        acc = y[:, 0:out_len, col:col + C]
        for t in range(1, k):
            acc = acc + y[:, t:t + out_len, col + t * C:col + (t + 1) * C]
        # Bias is time-invariant and ReLU is monotone -> max-pool first.
        pooled = jnp.max(acc, axis=1)                                   # (BT, C)
        pooled = jnp.maximum(pooled + bias_ref[kk:kk + 1, 0:C], 0.0)    # (BT, C)
        # fc1 as a sum of partial matmuls (replaces concat on the lane axis).
        h_acc = h_acc + jnp.dot(pooled, fc1w_ref[kk * C:(kk + 1) * C, :],
                                preferred_element_type=jnp.float32)
        col += k * C

    # dropout: identity (eval mode)
    # TODO(synk): training-mode dropout would need pltpu.prng_* inside the kernel.
    h = jnp.maximum(h_acc + bias_ref[3:4, :], 0.0)                      # (BT, 128)
    out_ref[...] = (jnp.dot(h, fc2w_ref[...],
                            preferred_element_type=jnp.float32)
                    + bias_ref[4:5, :])                                 # (BT, 128)


# ---------------------------------------------------------------------------
# Parameter fusion / lane padding (host-side, one-time)
# ---------------------------------------------------------------------------
def _prepare_fused_params(params, config):
    ks = tuple(config["kernel_size"])
    C = config["output_channels"]
    E = config["vector_size"]
    H = config["linear_one"]
    ncls = config["class_num"]

    # Embedding table: pad embedding dim E -> 128 lanes (zeros are free work).
    emb = jnp.pad(params["embedding"].astype(jnp.float32), ((0, 0), (0, LANE - E)))

    # All conv tap weights fused into one (128, 128) matrix.
    # Column block [off_k + t*C : off_k + (t+1)*C] holds tap t of kernel k.
    w_all = jnp.zeros((LANE, LANE), jnp.float32)
    off = 0
    for kk, k in enumerate(ks):
        w = params["conv_w"][kk].astype(jnp.float32)           # (k, E, C)
        wt = jnp.transpose(w, (1, 0, 2)).reshape(E, k * C)     # (E, k*C), tap-major
        w_all = w_all.at[:E, off:off + k * C].set(wt)
        off += k * C

    # All biases packed into one lane-dense (8, 128) block:
    #   rows 0..len(ks)-1 : conv biases (lanes 0..C-1)
    #   row  3            : fc1 bias   (lanes 0..H-1)
    #   row  4            : fc2 bias   (lanes 0..ncls-1)
    bias_all = jnp.zeros((8, LANE), jnp.float32)
    for kk in range(len(ks)):
        bias_all = bias_all.at[kk, :C].set(
            params["conv_b"][kk].astype(jnp.float32).reshape(C))
    bias_all = bias_all.at[3, :H].set(params["fc1_b"].astype(jnp.float32).reshape(H))
    bias_all = bias_all.at[4, :ncls].set(params["fc2_b"].astype(jnp.float32).reshape(ncls))

    fc1_w = jnp.pad(params["fc1_w"].astype(jnp.float32),
                    ((0, 0), (0, LANE - H)))                   # (3*C, 128)
    fc2_w = jnp.pad(params["fc2_w"].astype(jnp.float32),
                    ((0, LANE - H), (0, LANE - ncls)))         # (128, 128)

    return dict(embedding=emb, w_all=w_all, bias_all=bias_all,
                fc1_w=fc1_w, fc2_w=fc2_w)


# ---------------------------------------------------------------------------
# Forward wrapper
# ---------------------------------------------------------------------------
def news_model_forward(x_tokens, params, config):
    """x_tokens: (B, L) int32 token ids.  Returns logits (B, class_num) f32."""
    ks = tuple(config["kernel_size"])
    C = config["output_channels"]
    class_num = config["class_num"]
    B, L = x_tokens.shape

    p = _prepare_fused_params(params, config)

    # Embedding lookup (plain-JAX gather glue); table is already lane-padded.
    emb = jnp.take(p["embedding"], x_tokens, axis=0)           # (B, L, 128)

    # Pad batch to a multiple of the batch tile (padded rows are zeros).
    B_pad = max(BT, ((B + BT - 1) // BT) * BT)
    if B_pad != B:
        emb = jnp.pad(emb, ((0, B_pad - B), (0, 0), (0, 0)))

    kernel_fn = functools.partial(_news_kernel, ks, C)
    grid = (B_pad // BT,)

    def full(shape):
        return pl.BlockSpec(shape, lambda b: (0,) * len(shape))

    out = pl.pallas_call(
        kernel_fn,
        out_shape=jax.ShapeDtypeStruct((B_pad, LANE), jnp.float32),
        grid=grid,
        in_specs=[
            pl.BlockSpec((BT, L, LANE), lambda b: (b, 0, 0)),  # embedded input
            full(p["w_all"].shape),                            # fused conv taps (128,128)
            full(p["bias_all"].shape),                         # packed biases   (8,128)
            full(p["fc1_w"].shape),                            # fc1 weight      (24,128)
            full(p["fc2_w"].shape),                            # fc2 weight      (128,128)
        ],
        out_specs=pl.BlockSpec((BT, LANE), lambda b: (b, 0)),  # lane-dense logits
        compiler_params=pltpu.CompilerParams(
            dimension_semantics=("parallel",)),
    )(emb, p["w_all"], p["bias_all"], p["fc1_w"], p["fc2_w"])

    return out[:B, :class_num]


# ---------------------------------------------------------------------------
# Deterministic parameter construction (matches nn.Module shapes)
# ---------------------------------------------------------------------------
def make_params(key, config):
    ks = tuple(config["kernel_size"])
    C = config["output_channels"]
    E = config["vector_size"]
    V = config["vocab_size"]
    H = config["linear_one"]
    num_classes = config["class_num"]
    feat_dim = len(ks) * C

    keys = jax.random.split(key, 4 + 2 * len(ks))
    it = iter(keys)

    # Embedding table (V, E), padding_idx=0 -> row 0 zeroed.
    emb_table = jax.random.normal(next(it), (V, E), jnp.float32) * 0.1
    emb_table = emb_table.at[0].set(0.0)

    conv_w, conv_b = [], []
    for k in ks:
        # PyTorch Conv1d weight is (C, E, k); stored here transposed as
        # (k, E, C) so conv tap t uses W[t] : (E, C).
        w = jax.random.normal(next(it), (k, E, C), jnp.float32) * (1.0 / jnp.sqrt(E * k))
        b = jax.random.normal(next(it), (1, C), jnp.float32) * 0.01
        conv_w.append(w)
        conv_b.append(b)

    fc1_w = jax.random.normal(next(it), (feat_dim, H), jnp.float32) * (1.0 / jnp.sqrt(feat_dim))
    fc1_b = jnp.zeros((1, H), jnp.float32)
    fc2_w = jax.random.normal(next(it), (H, num_classes), jnp.float32) * (1.0 / jnp.sqrt(H))
    fc2_b = jnp.zeros((1, num_classes), jnp.float32)

    return dict(
        embedding=emb_table,
        conv_w=conv_w, conv_b=conv_b,
        fc1_w=fc1_w, fc1_b=fc1_b,
        fc2_w=fc2_w, fc2_b=fc2_b,
    )


# ---------------------------------------------------------------------------
# Pure-JAX reference (mirrors the PyTorch forward, eval-mode dropout)
# ---------------------------------------------------------------------------
def _reference_forward(x_tokens, params, config):
    ks = tuple(config["kernel_size"])
    C = config["output_channels"]
    emb = jnp.take(params["embedding"], x_tokens, axis=0)      # (B, L, E)
    L = emb.shape[1]
    pooled = []
    for kk, k in enumerate(ks):
        w = params["conv_w"][kk]                               # (k, E, C)
        b = params["conv_b"][kk].reshape(1, 1, C)
        out_len = L - k + 1
        acc = jnp.zeros((emb.shape[0], out_len, C), jnp.float32)
        for t in range(k):
            acc = acc + jnp.einsum("ble,ec->blc", emb[:, t:t + out_len, :], w[t])
        conv = jnp.maximum(acc + b, 0.0)
        pooled.append(jnp.max(conv, axis=1))
    feat = jnp.concatenate(pooled, axis=-1)
    h = jnp.maximum(feat @ params["fc1_w"] + params["fc1_b"], 0.0)
    return h @ params["fc2_w"] + params["fc2_b"]


if __name__ == "__main__":
    key = jax.random.PRNGKey(0)
    pkey, xkey = jax.random.split(key)

    params = make_params(pkey, CONFIG)

    # Token ids in [0, vocab); force a couple of padding (0) tokens.
    x = jax.random.randint(xkey, (BATCH, SEQ_LEN), 0, CONFIG["vocab_size"], jnp.int32)
    x = x.at[:, -2:].set(0)

    logits = news_model_forward(x, params, CONFIG)
    logits = jax.block_until_ready(logits)

    assert logits.shape == (BATCH, CONFIG["class_num"])
    assert logits.dtype == jnp.float32

    ref = _reference_forward(x, params, CONFIG)
    # Tolerance accounts for MXU f32 pass-decomposition vs XLA default precision.
    assert jnp.allclose(logits, ref, atol=2e-3, rtol=2e-3), "mismatch vs reference"

    print("KERNEL_OK")
</pallas_src>

<mosaic_0001>
module attributes {stable_mosaic.version = 11 : i64} {
  func.func @_news_kernel(%arg0: i32, %arg1: memref<8x16x128xf32, #tpu.memory_space<vmem>>, %arg2: memref<128x128xf32, #tpu.memory_space<vmem>>, %arg3: memref<8x128xf32, #tpu.memory_space<vmem>>, %arg4: memref<24x128xf32, #tpu.memory_space<vmem>>, %arg5: memref<128x128xf32, #tpu.memory_space<vmem>>, %arg6: memref<8x128xf32, #tpu.memory_space<vmem>>) attributes {dimension_semantics = [#tpu.dimension_semantics<parallel>], iteration_bounds = array<i64: 1>, scalar_prefetch = 0 : i64, scratch_operands = 0 : i64, tpu.core_type = #tpu.core_type<tc>, window_params = [{transform_indices = @transform_0, window_bounds = array<i64: 8, 16, 128>}, {pipeline_mode = #tpu.pipeline_mode<synchronous>, transform_indices = @transform_1, window_bounds = array<i64: 128, 128>}, {pipeline_mode = #tpu.pipeline_mode<synchronous>, transform_indices = @transform_2, window_bounds = array<i64: 8, 128>}, {pipeline_mode = #tpu.pipeline_mode<synchronous>, transform_indices = @transform_3, window_bounds = array<i64: 24, 128>}, {pipeline_mode = #tpu.pipeline_mode<synchronous>, transform_indices = @transform_4, window_bounds = array<i64: 128, 128>}, {transform_indices = @transform_5, window_bounds = array<i64: 8, 128>}]} {
    %c0 = arith.constant 0 : index
    %c0_0 = arith.constant 0 : index
    %c0_1 = arith.constant 0 : index
    %0 = vector.load %arg1[%c0, %c0_0, %c0_1] : memref<8x16x128xf32, #tpu.memory_space<vmem>>, vector<8x16x128xf32>
    %1 = vector.shape_cast %0 : vector<8x16x128xf32> to vector<128x128xf32>
    %c0_2 = arith.constant 0 : index
    %c0_3 = arith.constant 0 : index
    %2 = vector.load %arg2[%c0_2, %c0_3] : memref<128x128xf32, #tpu.memory_space<vmem>>, vector<128x128xf32>
    %cst = arith.constant dense<0.000000e+00> : vector<128x128xf32>
    %3 = tpu.matmul %1, %2, %cst {dimension_numbers = #tpu.dot_dimension_numbers<[1], [0], [0], [1], [0, 0, 1, 1], [], []>} : vector<128x128xf32>, vector<128x128xf32>, vector<128x128xf32> -> vector<128x128xf32>
    %4 = vector.shape_cast %3 : vector<128x128xf32> to vector<8x16x128xf32>
    %cst_4 = arith.constant 0.000000e+00 : f32
    %5 = vector.broadcast %cst_4 : f32 to vector<8x128xf32>
    %6 = vector.extract_strided_slice %4 {offsets = [0, 0, 0], sizes = [8, 15, 8], strides = [1, 1, 1]} : vector<8x16x128xf32> to vector<8x15x8xf32>
    %7 = vector.extract_strided_slice %4 {offsets = [0, 1, 8], sizes = [8, 15, 8], strides = [1, 1, 1]} : vector<8x16x128xf32> to vector<8x15x8xf32>
    %8 = arith.addf %6, %7 : vector<8x15x8xf32>
    %cst_5 = arith.constant dense<0xFF800000> : vector<8x8xf32>
    %9 = vector.multi_reduction <maximumf>, %8, %cst_5 [1] : vector<8x15x8xf32> to vector<8x8xf32>
    %c0_6 = arith.constant 0 : index
    %c0_7 = arith.constant 0 : index
    %10 = vector.load %arg3[%c0_6, %c0_7] : memref<8x128xf32, #tpu.memory_space<vmem>>, vector<1x8xf32>
    %11 = vector.broadcast %10 : vector<1x8xf32> to vector<8x8xf32>
    %12 = arith.addf %9, %11 : vector<8x8xf32>
    %cst_8 = arith.constant 0.000000e+00 : f32
    %13 = vector.broadcast %cst_8 : f32 to vector<8x8xf32>
    %14 = arith.maximumf %12, %13 : vector<8x8xf32>
    %c0_9 = arith.constant 0 : index
    %c0_10 = arith.constant 0 : index
    %15 = vector.load %arg4[%c0_9, %c0_10] : memref<24x128xf32, #tpu.memory_space<vmem>>, vector<8x128xf32>
    %cst_11 = arith.constant dense<0.000000e+00> : vector<8x128xf32>
    %16 = tpu.matmul %14, %15, %cst_11 {dimension_numbers = #tpu.dot_dimension_numbers<[1], [0], [0], [1], [0, 0, 1, 1], [], []>} : vector<8x8xf32>, vector<8x128xf32>, vector<8x128xf32> -> vector<8x128xf32>
    %17 = arith.addf %5, %16 : vector<8x128xf32>
    %18 = vector.extract_strided_slice %4 {offsets = [0, 0, 16], sizes = [8, 14, 8], strides = [1, 1, 1]} : vector<8x16x128xf32> to vector<8x14x8xf32>
    %19 = vector.extract_strided_slice %4 {offsets = [0, 1, 24], sizes = [8, 14, 8], strides = [1, 1, 1]} : vector<8x16x128xf32> to vector<8x14x8xf32>
    %20 = arith.addf %18, %19 : vector<8x14x8xf32>
    %21 = vector.extract_strided_slice %4 {offsets = [0, 2, 32], sizes = [8, 14, 8], strides = [1, 1, 1]} : vector<8x16x128xf32> to vector<8x14x8xf32>
    %22 = arith.addf %20, %21 : vector<8x14x8xf32>
    %cst_12 = arith.constant dense<0xFF800000> : vector<8x8xf32>
    %23 = vector.multi_reduction <maximumf>, %22, %cst_12 [1] : vector<8x14x8xf32> to vector<8x8xf32>
    %c1 = arith.constant 1 : index
    %c0_13 = arith.constant 0 : index
    %24 = vector.load %arg3[%c1, %c0_13] : memref<8x128xf32, #tpu.memory_space<vmem>>, vector<1x8xf32>
    %25 = vector.broadcast %24 : vector<1x8xf32> to vector<8x8xf32>
    %26 = arith.addf %23, %25 : vector<8x8xf32>
    %cst_14 = arith.constant 0.000000e+00 : f32
    %27 = vector.broadcast %cst_14 : f32 to vector<8x8xf32>
    %28 = arith.maximumf %26, %27 : vector<8x8xf32>
    %c8 = arith.constant 8 : index
    %c0_15 = arith.constant 0 : index
    %29 = vector.load %arg4[%c8, %c0_15] : memref<24x128xf32, #tpu.memory_space<vmem>>, vector<8x128xf32>
    %cst_16 = arith.constant dense<0.000000e+00> : vector<8x128xf32>
    %30 = tpu.matmul %28, %29, %cst_16 {dimension_numbers = #tpu.dot_dimension_numbers<[1], [0], [0], [1], [0, 0, 1, 1], [], []>} : vector<8x8xf32>, vector<8x128xf32>, vector<8x128xf32> -> vector<8x128xf32>
    %31 = arith.addf %17, %30 : vector<8x128xf32>
    %32 = vector.extract_strided_slice %4 {offsets = [0, 0, 40], sizes = [8, 13, 8], strides = [1, 1, 1]} : vector<8x16x128xf32> to vector<8x13x8xf32>
    %33 = vector.extract_strided_slice %4 {offsets = [0, 1, 48], sizes = [8, 13, 8], strides = [1, 1, 1]} : vector<8x16x128xf32> to vector<8x13x8xf32>
    %34 = arith.addf %32, %33 : vector<8x13x8xf32>
    %35 = vector.extract_strided_slice %4 {offsets = [0, 2, 56], sizes = [8, 13, 8], strides = [1, 1, 1]} : vector<8x16x128xf32> to vector<8x13x8xf32>
    %36 = arith.addf %34, %35 : vector<8x13x8xf32>
    %37 = vector.extract_strided_slice %4 {offsets = [0, 3, 64], sizes = [8, 13, 8], strides = [1, 1, 1]} : vector<8x16x128xf32> to vector<8x13x8xf32>
    %38 = arith.addf %36, %37 : vector<8x13x8xf32>
    %cst_17 = arith.constant dense<0xFF800000> : vector<8x8xf32>
    %39 = vector.multi_reduction <maximumf>, %38, %cst_17 [1] : vector<8x13x8xf32> to vector<8x8xf32>
    %c2 = arith.constant 2 : index
    %c0_18 = arith.constant 0 : index
    %40 = vector.load %arg3[%c2, %c0_18] : memref<8x128xf32, #tpu.memory_space<vmem>>, vector<1x8xf32>
    %41 = vector.broadcast %40 : vector<1x8xf32> to vector<8x8xf32>
    %42 = arith.addf %39, %41 : vector<8x8xf32>
    %cst_19 = arith.constant 0.000000e+00 : f32
    %43 = vector.broadcast %cst_19 : f32 to vector<8x8xf32>
    %44 = arith.maximumf %42, %43 : vector<8x8xf32>
    %c16 = arith.constant 16 : index
    %c0_20 = arith.constant 0 : index
    %45 = vector.load %arg4[%c16, %c0_20] : memref<24x128xf32, #tpu.memory_space<vmem>>, vector<8x128xf32>
    %cst_21 = arith.constant dense<0.000000e+00> : vector<8x128xf32>
    %46 = tpu.matmul %44, %45, %cst_21 {dimension_numbers = #tpu.dot_dimension_numbers<[1], [0], [0], [1], [0, 0, 1, 1], [], []>} : vector<8x8xf32>, vector<8x128xf32>, vector<8x128xf32> -> vector<8x128xf32>
    %47 = arith.addf %31, %46 : vector<8x128xf32>
    %c3 = arith.constant 3 : index
    %c0_22 = arith.constant 0 : index
    %48 = vector.load %arg3[%c3, %c0_22] : memref<8x128xf32, #tpu.memory_space<vmem>>, vector<1x128xf32>
    %49 = vector.broadcast %48 : vector<1x128xf32> to vector<8x128xf32>
    %50 = arith.addf %47, %49 : vector<8x128xf32>
    %cst_23 = arith.constant 0.000000e+00 : f32
    %51 = vector.broadcast %cst_23 : f32 to vector<8x128xf32>
    %52 = arith.maximumf %50, %51 : vector<8x128xf32>
    %c0_24 = arith.constant 0 : index
    %c0_25 = arith.constant 0 : index
    %53 = vector.load %arg5[%c0_24, %c0_25] : memref<128x128xf32, #tpu.memory_space<vmem>>, vector<128x128xf32>
    %cst_26 = arith.constant dense<0.000000e+00> : vector<8x128xf32>
    %54 = tpu.matmul %52, %53, %cst_26 {dimension_numbers = #tpu.dot_dimension_numbers<[1], [0], [0], [1], [0, 0, 1, 1], [], []>} : vector<8x128xf32>, vector<128x128xf32>, vector<8x128xf32> -> vector<8x128xf32>
    %c4 = arith.constant 4 : index
    %c0_27 = arith.constant 0 : index
    %55 = vector.load %arg3[%c4, %c0_27] : memref<8x128xf32, #tpu.memory_space<vmem>>, vector<1x128xf32>
    %56 = vector.broadcast %55 : vector<1x128xf32> to vector<8x128xf32>
    %57 = arith.addf %54, %56 : vector<8x128xf32>
    %c0_28 = arith.constant 0 : index
    %c0_29 = arith.constant 0 : index
    %58 = vector.load %arg6[%c0_28, %c0_29] : memref<8x128xf32, #tpu.memory_space<vmem>>, vector<8x128xf32>
    tpu.vector_store %arg6[%c0_28, %c0_29], %57 {strides = array<i32>} : memref<8x128xf32, #tpu.memory_space<vmem>>, vector<8x128xf32>,
    return
  }
  func.func @transform_0(%arg0: i32) -> (i32, i32, i32) {
    %c0_i32 = arith.constant 0 : i32
    %c0_i32_0 = arith.constant 0 : i32
    %c0_i32_1 = arith.constant 0 : i32
    return %arg0, %c0_i32, %c0_i32_0 : i32, i32, i32
  }
  func.func @transform_1(%arg0: i32) -> (i32, i32) {
    %c0_i32 = arith.constant 0 : i32
    %c0_i32_0 = arith.constant 0 : i32
    %c0_i32_1 = arith.constant 0 : i32
    return %c0_i32, %c0_i32_0 : i32, i32
  }
  func.func @transform_2(%arg0: i32) -> (i32, i32) {
    %c0_i32 = arith.constant 0 : i32
    %c0_i32_0 = arith.constant 0 : i32
    %c0_i32_1 = arith.constant 0 : i32
    return %c0_i32, %c0_i32_0 : i32, i32
  }
  func.func @transform_3(%arg0: i32) -> (i32, i32) {
    %c0_i32 = arith.constant 0 : i32
    %c0_i32_0 = arith.constant 0 : i32
    %c0_i32_1 = arith.constant 0 : i32
    return %c0_i32, %c0_i32_0 : i32, i32
  }
  func.func @transform_4(%arg0: i32) -> (i32, i32) {
    %c0_i32 = arith.constant 0 : i32
    %c0_i32_0 = arith.constant 0 : i32
    %c0_i32_1 = arith.constant 0 : i32
    return %c0_i32, %c0_i32_0 : i32, i32
  }
  func.func @transform_5(%arg0: i32) -> (i32, i32) {
    %c0_i32 = arith.constant 0 : i32
    %c0_i32_0 = arith.constant 0 : i32
    return %arg0, %c0_i32 : i32, i32
  }
}

</mosaic_0001>

<llo_original>
// kernel: tpu_custom_call.1
$region0: #{tpu_custom_call.1}
  #allocation0 [shape = 'u32[]', space=smem, size = 0x4, offset = 0x4, fixed_abs, tag = 'smem constant byte address 0x4 - core index']
  #allocation1 [shape = 'u32[144,128]{1,0:T(1,128)}', space=vmem, size = 0x12000, scoped, tag = 'internal scratch']
  %s0 = inlined_call_operand.hbm [shape: f32[8,16,128], index: 0, kind: input, shape index: {}]
  %s1 = inlined_call_operand.hbm [shape: f32[128,128], index: 1, kind: input, shape index: {}]
  %s2 = inlined_call_operand.hbm [shape: f32[8,128], index: 2, kind: input, shape index: {}]
  %s3 = inlined_call_operand.hbm [shape: f32[24,128], index: 3, kind: input, shape index: {}]
  %s4 = inlined_call_operand.hbm [shape: f32[128,128], index: 4, kind: input, shape index: {}]
  %s5 = inlined_call_operand.hbm [shape: f32[8,128], index: 5, kind: output, shape index: {}]
  %s6 = sld [smem:[#allocation0]]
  $region50: #{tpu_custom_call.1} parent=0
    _
  %s8 = ssub.s32 1, %s6
  %s9 = scalar_select 0, %s8, %s6
  $region1: #{tpu_custom_call.1} parent=0
    #allocation2 [shape = 'u8[65536]{0}', space=vmem, size = 0x10000, scoped, tag = 'input window, operand 0, single buffered']
    #allocation3 [shape = 's32[1]{0}', space=sflag, size = 0x4, scoped, tag = 'scoped memory for tpu_custom_call.1']
    #allocation4 [shape = 's32[1]{0}', space=sflag, size = 0x4, scoped, tag = 'scoped memory for tpu_custom_call.1']
    #allocation5 [shape = 'u8[65536]{0}', space=vmem, size = 0x10000, scoped, tag = 'input window, operand 1, single buffered']
    #allocation6 [shape = 's32[1]{0}', space=sflag, size = 0x4, scoped, tag = 'scoped memory for tpu_custom_call.1']
    #allocation7 [shape = 'u8[4096]{0}', space=vmem, size = 0x1000, scoped, tag = 'input window, operand 2, single buffered']
    #allocation8 [shape = 'u8[12288]{0}', space=vmem, size = 0x3000, scoped, tag = 'input window, operand 3, single buffered']
    #allocation9 [shape = 's32[1]{0}', space=sflag, size = 0x4, scoped, tag = 'scoped memory for tpu_custom_call.1']
    #allocation10 [shape = 'u8[65536]{0}', space=vmem, size = 0x10000, scoped, tag = 'input window, operand 4, single buffered']
    #allocation11 [shape = 'u8[4096]{0}', space=vmem, size = 0x1000, scoped, tag = 'output window, operand 0, single buffered']
    %10 = vsyncpa [#allocation3], 0
    %11 = vsyncpa [#allocation6], 0
    %12 = vsyncpa [#allocation9], 0
    %13 = vsyncpa [#allocation4], 0
    // Predicated region
    $region2: #{tpu_custom_call.1} parent=1 // pred_check
      _
    $region3: #{tpu_custom_call.1} parent=1 // pred_check_branch
      %15 = sbr.rel (0) target = $region5
    $region4: #{tpu_custom_call.1} parent=1 // pred_region
      %s17 = ssub.s32 2048, 2048
      %18 = vsyncadd [#allocation3], %s17
      %s19 = sshll.u32 [#allocation2], 4
      %s20 = int_to_ptr.vmem [resolvable:$true] %s19
      %25 = dma.hbm_to_vmem [thread:$0]  %s0, 2048, %s20, [#allocation3], 128, 128, 8
    $region5: #{tpu_custom_call.1} parent=1 // pred_fallthru
      _
    // Predicated region
    $region6: #{tpu_custom_call.1} parent=1 // pred_check
      _
    $region7: #{tpu_custom_call.1} parent=1 // pred_check_branch
      %27 = sbr.rel (0) target = $region9
    $region8: #{tpu_custom_call.1} parent=1 // pred_region
      %s29 = ssub.s32 2048, 2048
      %30 = vsyncadd [#allocation6], %s29
      %s31 = sshll.u32 [#allocation5], 4
      %s32 = int_to_ptr.vmem [resolvable:$true] %s31
      %37 = dma.hbm_to_vmem [thread:$0]  %s1, 2048, %s32, [#allocation6], 128, 128, 8
    $region9: #{tpu_custom_call.1} parent=1 // pred_fallthru
      _
    // Predicated region
    $region10: #{tpu_custom_call.1} parent=1 // pred_check
      _
    $region11: #{tpu_custom_call.1} parent=1 // pred_check_branch
      %39 = sbr.rel (0) target = $region13
    $region12: #{tpu_custom_call.1} parent=1 // pred_region
      %s41 = ssub.s32 128, 128
      %42 = vsyncadd [#allocation6], %s41
      %s44 = sshll.u32 [#allocation7], 4
      %s45 = int_to_ptr.vmem [resolvable:$true] %s44
      %47 = dma.hbm_to_vmem [thread:$0]  %s2, 128, %s45, [#allocation6]
    $region13: #{tpu_custom_call.1} parent=1 // pred_fallthru
      _
    // Predicated region
    $region14: #{tpu_custom_call.1} parent=1 // pred_check
      _
    $region15: #{tpu_custom_call.1} parent=1 // pred_check_branch
      %49 = sbr.rel (0) target = $region17
    $region16: #{tpu_custom_call.1} parent=1 // pred_region
      %s51 = ssub.s32 384, 384
      %52 = vsyncadd [#allocation9], %s51
      %s53 = sshll.u32 [#allocation8], 4
      %s54 = int_to_ptr.vmem [resolvable:$true] %s53
      %59 = dma.hbm_to_vmem [thread:$0]  %s3, 384, %s54, [#allocation9], 128, 128, 8
    $region17: #{tpu_custom_call.1} parent=1 // pred_fallthru
      _
    // Predicated region
    $region18: #{tpu_custom_call.1} parent=1 // pred_check
      _
    $region19: #{tpu_custom_call.1} parent=1 // pred_check_branch
      %61 = sbr.rel (0) target = $region21
    $region20: #{tpu_custom_call.1} parent=1 // pred_region
      %s63 = ssub.s32 2048, 2048
      %64 = vsyncadd [#allocation9], %s63
      %s65 = sshll.u32 [#allocation10], 4
      %s66 = int_to_ptr.vmem [resolvable:$true] %s65
      %71 = dma.hbm_to_vmem [thread:$0]  %s4, 2048, %s66, [#allocation9], 128, 128, 8
    $region21: #{tpu_custom_call.1} parent=1 // pred_fallthru
      _
    // Predicated region
    $region22: #{tpu_custom_call.1} parent=1 // pred_check
      _
    $region23: #{tpu_custom_call.1} parent=1 // pred_check_branch
      %73 = sbr.rel (0) target = $region25
    $region24: #{tpu_custom_call.1} parent=1 // pred_region
      %74 = dma.done [#allocation3], 2048
    $region25: #{tpu_custom_call.1} parent=1 // pred_fallthru
      _
    // Predicated region
    $region26: #{tpu_custom_call.1} parent=1 // pred_check
      _
    $region27: #{tpu_custom_call.1} parent=1 // pred_check_branch
      %76 = sbr.rel (0) target = $region29
    $region28: #{tpu_custom_call.1} parent=1 // pred_region
      %77 = dma.done [#allocation6], 2048
    $region29: #{tpu_custom_call.1} parent=1 // pred_fallthru
      _
    // Predicated region
    $region30: #{tpu_custom_call.1} parent=1 // pred_check
      _
    $region31: #{tpu_custom_call.1} parent=1 // pred_check_branch
      %79 = sbr.rel (0) target = $region33
    $region32: #{tpu_custom_call.1} parent=1 // pred_region
      %80 = dma.done [#allocation6], 128
    $region33: #{tpu_custom_call.1} parent=1 // pred_fallthru
      _
    // Predicated region
    $region34: #{tpu_custom_call.1} parent=1 // pred_check
      _
    $region35: #{tpu_custom_call.1} parent=1 // pred_check_branch
      %82 = sbr.rel (0) target = $region37
    $region36: #{tpu_custom_call.1} parent=1 // pred_region
      %83 = dma.done [#allocation9], 384
    $region37: #{tpu_custom_call.1} parent=1 // pred_fallthru
      _
    // Predicated region
    $region38: #{tpu_custom_call.1} parent=1 // pred_check
      _
    $region39: #{tpu_custom_call.1} parent=1 // pred_check_branch
      %85 = sbr.rel (0) target = $region41
    $region40: #{tpu_custom_call.1} parent=1 // pred_region
      %86 = dma.done [#allocation9], 2048
    $region41: #{tpu_custom_call.1} parent=1 // pred_fallthru
      _
    %v87 = vld [vmem:[#allocation2] sm:$0xff]
    %v88 = vld [vmem:[#allocation2 + $0x8] sm:$0xff]
    %v89 = vld [vmem:[#allocation2 + $0x10] sm:$0xff]
    %v90 = vld [vmem:[#allocation2 + $0x18] sm:$0xff]
    %v91 = vld [vmem:[#allocation2 + $0x20] sm:$0xff]
    %v92 = vld [vmem:[#allocation2 + $0x28] sm:$0xff]
    %v93 = vld [vmem:[#allocation2 + $0x30] sm:$0xff]
    %v94 = vld [vmem:[#allocation2 + $0x38] sm:$0xff]
    %v95 = vld [vmem:[#allocation2 + $0x40] sm:$0xff]
    %v96 = vld [vmem:[#allocation2 + $0x48] sm:$0xff]
    %v97 = vld [vmem:[#allocation2 + $0x50] sm:$0xff]
    %v98 = vld [vmem:[#allocation2 + $0x58] sm:$0xff]
    %v99 = vld [vmem:[#allocation2 + $0x60] sm:$0xff]
    %v100 = vld [vmem:[#allocation2 + $0x68] sm:$0xff]
    %v101 = vld [vmem:[#allocation2 + $0x70] sm:$0xff]
    %v102 = vld [vmem:[#allocation2 + $0x78] sm:$0xff]
    %v103 = vld [vmem:[#allocation5] sm:$0xff]
    %v104 = vld [vmem:[#allocation5 + $0x8] sm:$0xff]
    %v105 = vld [vmem:[#allocation5 + $0x10] sm:$0xff]
    %v106 = vld [vmem:[#allocation5 + $0x18] sm:$0xff]
    %v107 = vld [vmem:[#allocation5 + $0x20] sm:$0xff]
    %v108 = vld [vmem:[#allocation5 + $0x28] sm:$0xff]
    %v109 = vld [vmem:[#allocation5 + $0x30] sm:$0xff]
    %v110 = vld [vmem:[#allocation5 + $0x38] sm:$0xff]
    %v111 = vld [vmem:[#allocation5 + $0x40] sm:$0xff]
    %v112 = vld [vmem:[#allocation5 + $0x48] sm:$0xff]
    %v113 = vld [vmem:[#allocation5 + $0x50] sm:$0xff]
    %v114 = vld [vmem:[#allocation5 + $0x58] sm:$0xff]
    %v115 = vld [vmem:[#allocation5 + $0x60] sm:$0xff]
    %v116 = vld [vmem:[#allocation5 + $0x68] sm:$0xff]
    %v117 = vld [vmem:[#allocation5 + $0x70] sm:$0xff]
    %v118 = vld [vmem:[#allocation5 + $0x78] sm:$0xff]
    %119 = vmatprep.subr.mxu0 0.0
    %120 = vmatpush1.msra.mxu0 %v103
    %121 = vmatprep.subr.mxu0 0.0
    %122 = vmatpush1.msra.mxu0 %v104
    %123 = vmatprep.subr.mxu0 0.0
    %124 = vmatpush1.msra.mxu0 %v105
    %125 = vmatprep.subr.mxu0 0.0
    %126 = vmatpush1.msra.mxu0 %v106
    %127 = vmatprep.subr.mxu0 0.0
    %128 = vmatpush1.msra.mxu0 %v107
    %129 = vmatprep.subr.mxu0 0.0
    %130 = vmatpush1.msra.mxu0 %v108
    %131 = vmatprep.subr.mxu0 0.0
    %132 = vmatpush1.msra.mxu0 %v109
    %133 = vmatprep.subr.mxu0 0.0
    %134 = vmatpush1.msra.mxu0 %v110
    %135 = vmatprep.subr.mxu0 0.0
    %136 = vmatpush1.msra.mxu0 %v111
    %137 = vmatprep.subr.mxu0 0.0
    %138 = vmatpush1.msra.mxu0 %v112
    %139 = vmatprep.subr.mxu0 0.0
    %140 = vmatpush1.msra.mxu0 %v113
    %141 = vmatprep.subr.mxu0 0.0
    %142 = vmatpush1.msra.mxu0 %v114
    %143 = vmatprep.subr.mxu0 0.0
    %144 = vmatpush1.msra.mxu0 %v115
    %145 = vmatprep.subr.mxu0 0.0
    %146 = vmatpush1.msra.mxu0 %v116
    %147 = vmatprep.subr.mxu0 0.0
    %148 = vmatpush1.msra.mxu0 %v117
    %149 = vmatprep.subr.mxu0 0.0
    %150 = vmatpush1.msra.mxu0 %v118
    %151 = vmatprep.subr.mxu0 0.0
    %152 = vmatpush1.msra.mxu0 0.0
    %153 = vmatprep.subr.mxu0 0.0
    %154 = vmatpush1.msra.mxu0 0.0
    %155 = vmatprep.subr.mxu0 0.0
    %156 = vmatpush1.msra.mxu0 0.0
    %157 = vmatprep.subr.mxu0 0.0
    %158 = vmatpush1.msra.mxu0 0.0
    %159 = vmatprep.subr.mxu0 0.0
    %160 = vmatpush1.msra.mxu0 0.0
    %161 = vmatprep.subr.mxu0 0.0
    %162 = vmatpush1.msra.mxu0 0.0
    %163 = vmatprep.subr.mxu0 0.0
    %164 = vmatpush1.msra.mxu0 0.0
    %165 = vmatprep.subr.mxu0 0.0
    %166 = vmatpush1.msra.mxu0 0.0
    %167 = vmatprep.subr.mxu0 0.0
    %168 = vmatpush1.msra.mxu0 0.0
    %169 = vmatprep.subr.mxu0 0.0
    %170 = vmatpush1.msra.mxu0 0.0
    %171 = vmatprep.subr.mxu0 0.0
    %172 = vmatpush1.msra.mxu0 0.0
    %173 = vmatprep.subr.mxu0 0.0
    %174 = vmatpush1.msra.mxu0 0.0
    %175 = vmatprep.subr.mxu0 0.0
    %176 = vmatpush1.msra.mxu0 0.0
    %177 = vmatprep.subr.mxu0 0.0
    %178 = vmatpush1.msra.mxu0 0.0
    %179 = vmatprep.subr.mxu0 0.0
    %180 = vmatpush1.msra.mxu0 0.0
    %181 = vmatprep.subr.mxu0 0.0
    %182 = vmatpush1.msra.mxu0 0.0
    %183 = vmatprep.mubr.f32.mxu0 0.0
    %184 = vmatmul.mubr.f32.gmra.mrb[0].mxu0 %v87
    %v185 = vpop.f32.mrb[0].mxu0
    %v186 = vadd.f32 0.0, %v185
    %v187 = vpop.f32.mrb[0].mxu0
    %188 = vmatprep.mubr.f32.mxu0 0.0
    %189 = vmatmul.mubr.f32.gmra.mrb[0].mxu0 %v88
    %v190 = vpop.f32.mrb[0].mxu0
    %v191 = vadd.f32 0.0, %v190
    %v192 = vpop.f32.mrb[0].mxu0
    %193 = vmatprep.mubr.f32.mxu0 0.0
    %194 = vmatmul.mubr.f32.gmra.mrb[0].mxu0 %v89
    %v195 = vpop.f32.mrb[0].mxu0
    %v196 = vadd.f32 0.0, %v195
    %v197 = vpop.f32.mrb[0].mxu0
    %198 = vmatprep.mubr.f32.mxu0 0.0
    %199 = vmatmul.mubr.f32.gmra.mrb[0].mxu0 %v90
    %v200 = vpop.f32.mrb[0].mxu0
    %v201 = vadd.f32 0.0, %v200
    %v202 = vpop.f32.mrb[0].mxu0
    %203 = vmatprep.mubr.f32.mxu0 0.0
    %204 = vmatmul.mubr.f32.gmra.mrb[0].mxu0 %v91
    %v205 = vpop.f32.mrb[0].mxu0
    %v206 = vadd.f32 0.0, %v205
    %v207 = vpop.f32.mrb[0].mxu0
    %208 = vmatprep.mubr.f32.mxu0 0.0
    %209 = vmatmul.mubr.f32.gmra.mrb[0].mxu0 %v92
    %v210 = vpop.f32.mrb[0].mxu0
    %v211 = vadd.f32 0.0, %v210
    %v212 = vpop.f32.mrb[0].mxu0
    %213 = vmatprep.mubr.f32.mxu0 0.0
    %214 = vmatmul.mubr.f32.gmra.mrb[0].mxu0 %v93
    %v215 = vpop.f32.mrb[0].mxu0
    %v216 = vadd.f32 0.0, %v215
    %v217 = vpop.f32.mrb[0].mxu0
    %218 = vmatprep.mubr.f32.mxu0 0.0
    %219 = vmatmul.mubr.f32.gmra.mrb[0].mxu0 %v94
    %v220 = vpop.f32.mrb[0].mxu0
    %v221 = vadd.f32 0.0, %v220
    %v222 = vpop.f32.mrb[0].mxu0
    %223 = vmatprep.mubr.f32.mxu0 0.0
    %224 = vmatmul.mubr.f32.gmra.mrb[0].mxu0 %v95
    %v225 = vpop.f32.mrb[0].mxu0
    %v226 = vadd.f32 0.0, %v225
    %v227 = vpop.f32.mrb[0].mxu0
    %228 = vmatprep.mubr.f32.mxu0 0.0
    %229 = vmatmul.mubr.f32.gmra.mrb[0].mxu0 %v96
    %v230 = vpop.f32.mrb[0].mxu0
    %v231 = vadd.f32 0.0, %v230
    %v232 = vpop.f32.mrb[0].mxu0
    %233 = vmatprep.mubr.f32.mxu0 0.0
    %234 = vmatmul.mubr.f32.gmra.mrb[0].mxu0 %v97
    %v235 = vpop.f32.mrb[0].mxu0
    %v236 = vadd.f32 0.0, %v235
    %v237 = vpop.f32.mrb[0].mxu0
    %238 = vmatprep.mubr.f32.mxu0 0.0
    %239 = vmatmul.mubr.f32.gmra.mrb[0].mxu0 %v98
    %v240 = vpop.f32.mrb[0].mxu0
    %v241 = vadd.f32 0.0, %v240
    %v242 = vpop.f32.mrb[0].mxu0
    %243 = vmatprep.mubr.f32.mxu0 0.0
    %244 = vmatmul.mubr.f32.gmra.mrb[0].mxu0 %v99
    %v245 = vpop.f32.mrb[0].mxu0
    %v246 = vadd.f32 0.0, %v245
    %v247 = vpop.f32.mrb[0].mxu0
    %248 = vmatprep.mubr.f32.mxu0 0.0
    %249 = vmatmul.mubr.f32.gmra.mrb[0].mxu0 %v100
    %v250 = vpop.f32.mrb[0].mxu0
    %v251 = vadd.f32 0.0, %v250
    %v252 = vpop.f32.mrb[0].mxu0
    %253 = vmatprep.mubr.f32.mxu0 0.0
    %254 = vmatmul.mubr.f32.gmra.mrb[0].mxu0 %v101
    %v255 = vpop.f32.mrb[0].mxu0
    %v256 = vadd.f32 0.0, %v255
    %v257 = vpop.f32.mrb[0].mxu0
    %258 = vmatprep.mubr.f32.mxu0 0.0
    %259 = vmatmul.mubr.f32.gmra.mrb[0].mxu0 %v102
    %v260 = vpop.f32.mrb[0].mxu0
    %v261 = vadd.f32 0.0, %v260
    %v262 = vpop.f32.mrb[0].mxu0
    %263 = vdwg.mxu0
    %vm280 = vcmask 1046528
    %v281 = vrot.slane %v186, 1
    %v282 = vrot.slane %v191, 1
    %v283 = vsel %vm280, %v281, %v282
    %v284 = vrot.slane %v196, 1
    %v285 = vrot.slane %v201, 1
    %v286 = vsel %vm280, %v284, %v285
    %v287 = vrot.slane %v206, 1
    %v288 = vrot.slane %v211, 1
    %v289 = vsel %vm280, %v287, %v288
    %v290 = vrot.slane %v216, 1
    %v291 = vrot.slane %v221, 1
    %v292 = vsel %vm280, %v290, %v291
    %v293 = vrot.slane %v226, 1
    %v294 = vrot.slane %v231, 1
    %v295 = vsel %vm280, %v293, %v294
    %v296 = vrot.slane %v236, 1
    %v297 = vrot.slane %v241, 1
    %v298 = vsel %vm280, %v296, %v297
    %v299 = vrot.slane %v246, 1
    %v300 = vrot.slane %v251, 1
    %v301 = vsel %vm280, %v299, %v300
    %v302 = vrot.slane %v256, 1
    %v303 = vrot.slane %v261, 1
    %v304 = vsel %vm280, %v302, %v303
    %305 = vrot.lane.b32.xlu0 %v283, 120
    %v306 = vpop.permute.xlu0 %305
    %307 = vrot.lane.b32.xlu0 %v282, 120
    %v308 = vpop.permute.xlu0 %307
    %309 = vrot.lane.b32.xlu0 %v286, 120
    %v310 = vpop.permute.xlu0 %309
    %311 = vrot.lane.b32.xlu0 %v285, 120
    %v312 = vpop.permute.xlu0 %311
    %313 = vrot.lane.b32.xlu0 %v289, 120
    %v314 = vpop.permute.xlu0 %313
    %315 = vrot.lane.b32.xlu0 %v288, 120
    %v316 = vpop.permute.xlu0 %315
    %317 = vrot.lane.b32.xlu0 %v292, 120
    %v318 = vpop.permute.xlu0 %317
    %319 = vrot.lane.b32.xlu0 %v291, 120
    %v320 = vpop.permute.xlu0 %319
    %321 = vrot.lane.b32.xlu0 %v295, 120
    %v322 = vpop.permute.xlu0 %321
    %323 = vrot.lane.b32.xlu0 %v294, 120
    %v324 = vpop.permute.xlu0 %323
    %325 = vrot.lane.b32.xlu0 %v298, 120
    %v326 = vpop.permute.xlu0 %325
    %327 = vrot.lane.b32.xlu0 %v297, 120
    %v328 = vpop.permute.xlu0 %327
    %329 = vrot.lane.b32.xlu0 %v301, 120
    %v330 = vpop.permute.xlu0 %329
    %331 = vrot.lane.b32.xlu0 %v300, 120
    %v332 = vpop.permute.xlu0 %331
    %333 = vrot.lane.b32.xlu0 %v304, 120
    %v334 = vpop.permute.xlu0 %333
    %335 = vrot.lane.b32.xlu0 %v303, 120
    %v336 = vpop.permute.xlu0 %335
    %v353 = vadd.f32 %v186, %v306
    %v354 = vadd.f32 %v191, %v308
    %v355 = vadd.f32 %v196, %v310
    %v356 = vadd.f32 %v201, %v312
    %v357 = vadd.f32 %v206, %v314
    %v358 = vadd.f32 %v211, %v316
    %v359 = vadd.f32 %v216, %v318
    %v360 = vadd.f32 %v221, %v320
    %v361 = vadd.f32 %v226, %v322
    %v362 = vadd.f32 %v231, %v324
    %v363 = vadd.f32 %v236, %v326
    %v364 = vadd.f32 %v241, %v328
    %v365 = vadd.f32 %v246, %v330
    %v366 = vadd.f32 %v251, %v332
    %v367 = vadd.f32 %v256, %v334
    %v368 = vadd.f32 %v261, %v336
    %vm369 = vcmask 64512
    %v370 = vsel %vm369, %v353, -inf
    %vm371 = vcmask 63488
    %v372 = vsel %vm371, %v354, -inf
    %v373 = vmax.f32 %v370, %v372
    %v374 = vrot.slane %v373, 4
    %v375 = vmax.f32 %v373, %v374
    %v376 = vrot.slane %v375, 2
    %v377 = vmax.f32 %v375, %v376
    %v378 = vrot.slane %v377, 1
    %v379 = vmax.f32 %v377, %v378
    %v380 = vsel %vm369, %v355, -inf
    %v381 = vsel %vm371, %v356, -inf
    %v382 = vmax.f32 %v380, %v381
    %v383 = vrot.slane %v382, 4
    %v384 = vmax.f32 %v382, %v383
    %v385 = vrot.slane %v384, 2
    %v386 = vmax.f32 %v384, %v385
    %v387 = vrot.slane %v386, 1
    %v388 = vmax.f32 %v386, %v387
    %v389 = vsel %vm369, %v357, -inf
    %v390 = vsel %vm371, %v358, -inf
    %v391 = vmax.f32 %v389, %v390
    %v392 = vrot.slane %v391, 4
    %v393 = vmax.f32 %v391, %v392
    %v394 = vrot.slane %v393, 2
    %v395 = vmax.f32 %v393, %v394
    %v396 = vrot.slane %v395, 1
    %v397 = vmax.f32 %v395, %v396
    %v398 = vsel %vm369, %v359, -inf
    %v399 = vsel %vm371, %v360, -inf
    %v400 = vmax.f32 %v398, %v399
    %v401 = vrot.slane %v400, 4
    %v402 = vmax.f32 %v400, %v401
    %v403 = vrot.slane %v402, 2
    %v404 = vmax.f32 %v402, %v403
    %v405 = vrot.slane %v404, 1
    %v406 = vmax.f32 %v404, %v405
    %v407 = vsel %vm369, %v361, -inf
    %v408 = vsel %vm371, %v362, -inf
    %v409 = vmax.f32 %v407, %v408
    %v410 = vrot.slane %v409, 4
    %v411 = vmax.f32 %v409, %v410
    %v412 = vrot.slane %v411, 2
    %v413 = vmax.f32 %v411, %v412
    %v414 = vrot.slane %v413, 1
    %v415 = vmax.f32 %v413, %v414
    %v416 = vsel %vm369, %v363, -inf
    %v417 = vsel %vm371, %v364, -inf
    %v418 = vmax.f32 %v416, %v417
    %v419 = vrot.slane %v418, 4
    %v420 = vmax.f32 %v418, %v419
    %v421 = vrot.slane %v420, 2
    %v422 = vmax.f32 %v420, %v421
    %v423 = vrot.slane %v422, 1
    %v424 = vmax.f32 %v422, %v423
    %v425 = vsel %vm369, %v365, -inf
    %v426 = vsel %vm371, %v366, -inf
    %v427 = vmax.f32 %v425, %v426
    %v428 = vrot.slane %v427, 4
    %v429 = vmax.f32 %v427, %v428
    %v430 = vrot.slane %v429, 2
    %v431 = vmax.f32 %v429, %v430
    %v432 = vrot.slane %v431, 1
    %v433 = vmax.f32 %v431, %v432
    %v434 = vsel %vm369, %v367, -inf
    %v435 = vsel %vm371, %v368, -inf
    %v436 = vmax.f32 %v434, %v435
    %v437 = vrot.slane %v436, 4
    %v438 = vmax.f32 %v436, %v437
    %v439 = vrot.slane %v438, 2
    %v440 = vmax.f32 %v438, %v439
    %v441 = vrot.slane %v440, 1
    %v442 = vmax.f32 %v440, %v441
    %v443 = vld [vmem:[#allocation7] sm:$0x1]
    %v444 = vlaneseq
    %v445 = vshrl.u32 %v444, 7
    %v446 = vsub.s32 0, %v445
    %v447 = vrot.slane %v443, %v446
    %v448 = vadd.f32 %v379, %v447
    %v449 = vadd.f32 %v388, %v447
    %v450 = vadd.f32 %v397, %v447
    %v451 = vadd.f32 %v406, %v447
    %v452 = vadd.f32 %v415, %v447
    %v453 = vadd.f32 %v424, %v447
    %v454 = vadd.f32 %v433, %v447
    %v455 = vadd.f32 %v442, %v447
    %v456 = vmax.f32 %v448, 0.0
    %v457 = vmax.f32 %v449, 0.0
    %v458 = vmax.f32 %v450, 0.0
    %v459 = vmax.f32 %v451, 0.0
    %v460 = vmax.f32 %v452, 0.0
    %v461 = vmax.f32 %v453, 0.0
    %v462 = vmax.f32 %v454, 0.0
    %v463 = vmax.f32 %v455, 0.0
    %v464 = vld [vmem:[#allocation8] sm:$0xff]
    %vm465 = vcmask 1045504
    %v466 = vrot.slane %v186, 2
    %v467 = vrot.slane %v191, 2
    %v468 = vsel %vm465, %v466, %v467
    %v469 = vrot.slane %v196, 2
    %v470 = vrot.slane %v201, 2
    %v471 = vsel %vm465, %v469, %v470
    %v472 = vrot.slane %v206, 2
    %v473 = vrot.slane %v211, 2
    %v474 = vsel %vm465, %v472, %v473
    %v475 = vrot.slane %v216, 2
    %v476 = vrot.slane %v221, 2
    %v477 = vsel %vm465, %v475, %v476
    %v478 = vrot.slane %v226, 2
    %v479 = vrot.slane %v231, 2
    %v480 = vsel %vm465, %v478, %v479
    %v481 = vrot.slane %v236, 2
    %v482 = vrot.slane %v241, 2
    %v483 = vsel %vm465, %v481, %v482
    %v484 = vrot.slane %v246, 2
    %v485 = vrot.slane %v251, 2
    %v486 = vsel %vm465, %v484, %v485
    %v487 = vrot.slane %v256, 2
    %v488 = vrot.slane %v261, 2
    %v489 = vsel %vm465, %v487, %v488
    %490 = vrot.lane.b32.xlu0 %v468, 112
    %v491 = vpop.permute.xlu0 %490
    %492 = vrot.lane.b32.xlu0 %v467, 112
    %v493 = vpop.permute.xlu0 %492
    %494 = vrot.lane.b32.xlu0 %v471, 112
    %v495 = vpop.permute.xlu0 %494
    %496 = vrot.lane.b32.xlu0 %v470, 112
    %v497 = vpop.permute.xlu0 %496
    %498 = vrot.lane.b32.xlu0 %v474, 112
    %v499 = vpop.permute.xlu0 %498
    %500 = vrot.lane.b32.xlu0 %v473, 112
    %v501 = vpop.permute.xlu0 %500
    %502 = vrot.lane.b32.xlu0 %v477, 112
    %v503 = vpop.permute.xlu0 %502
    %504 = vrot.lane.b32.xlu0 %v476, 112
    %v505 = vpop.permute.xlu0 %504
    %506 = vrot.lane.b32.xlu0 %v480, 112
    %v507 = vpop.permute.xlu0 %506
    %508 = vrot.lane.b32.xlu0 %v479, 112
    %v509 = vpop.permute.xlu0 %508
    %510 = vrot.lane.b32.xlu0 %v483, 112
    %v511 = vpop.permute.xlu0 %510
    %512 = vrot.lane.b32.xlu0 %v482, 112
    %v513 = vpop.permute.xlu0 %512
    %514 = vrot.lane.b32.xlu0 %v486, 112
    %v515 = vpop.permute.xlu0 %514
    %516 = vrot.lane.b32.xlu0 %v485, 112
    %v517 = vpop.permute.xlu0 %516
    %518 = vrot.lane.b32.xlu0 %v489, 112
    %v519 = vpop.permute.xlu0 %518
    %520 = vrot.lane.b32.xlu0 %v488, 112
    %v521 = vpop.permute.xlu0 %520
    %v538 = vadd.f32 %v353, %v491
    %v539 = vadd.f32 %v354, %v493
    %v540 = vadd.f32 %v355, %v495
    %v541 = vadd.f32 %v356, %v497
    %v542 = vadd.f32 %v357, %v499
    %v543 = vadd.f32 %v358, %v501
    %v544 = vadd.f32 %v359, %v503
    %v545 = vadd.f32 %v360, %v505
    %v546 = vadd.f32 %v361, %v507
    %v547 = vadd.f32 %v362, %v509
    %v548 = vadd.f32 %v363, %v511
    %v549 = vadd.f32 %v364, %v513
    %v550 = vadd.f32 %v365, %v515
    %v551 = vadd.f32 %v366, %v517
    %v552 = vadd.f32 %v367, %v519
    %v553 = vadd.f32 %v368, %v521
    %vm554 = vcmask 195712
    %v555 = vsel %vm554, %v538, -inf
    %vm556 = vcmask 193664
    %v557 = vsel %vm556, %v539, -inf
    %v558 = vmax.f32 %v555, %v557
    %v559 = vrot.slane %v558, 4
    %v560 = vmax.f32 %v558, %v559
    %v561 = vrot.slane %v560, 2
    %v562 = vmax.f32 %v560, %v561
    %v563 = vrot.slane %v562, 1
    %v564 = vmax.f32 %v562, %v563
    %v565 = vsel %vm554, %v540, -inf
    %v566 = vsel %vm556, %v541, -inf
    %v567 = vmax.f32 %v565, %v566
    %v568 = vrot.slane %v567, 4
    %v569 = vmax.f32 %v567, %v568
    %v570 = vrot.slane %v569, 2
    %v571 = vmax.f32 %v569, %v570
    %v572 = vrot.slane %v571, 1
    %v573 = vmax.f32 %v571, %v572
    %v574 = vsel %vm554, %v542, -inf
    %v575 = vsel %vm556, %v543, -inf
    %v576 = vmax.f32 %v574, %v575
    %v577 = vrot.slane %v576, 4
    %v578 = vmax.f32 %v576, %v577
    %v579 = vrot.slane %v578, 2
    %v580 = vmax.f32 %v578, %v579
    %v581 = vrot.slane %v580, 1
    %v582 = vmax.f32 %v580, %v581
    %v583 = vsel %vm554, %v544, -inf
    %v584 = vsel %vm556, %v545, -inf
    %v585 = vmax.f32 %v583, %v584
    %v586 = vrot.slane %v585, 4
    %v587 = vmax.f32 %v585, %v586
    %v588 = vrot.slane %v587, 2
    %v589 = vmax.f32 %v587, %v588
    %v590 = vrot.slane %v589, 1
    %v591 = vmax.f32 %v589, %v590
    %v592 = vsel %vm554, %v546, -inf
    %v593 = vsel %vm556, %v547, -inf
    %v594 = vmax.f32 %v592, %v593
    %v595 = vrot.slane %v594, 4
    %v596 = vmax.f32 %v594, %v595
    %v597 = vrot.slane %v596, 2
    %v598 = vmax.f32 %v596, %v597
    %v599 = vrot.slane %v598, 1
    %v600 = vmax.f32 %v598, %v599
    %v601 = vsel %vm554, %v548, -inf
    %v602 = vsel %vm556, %v549, -inf
    %v603 = vmax.f32 %v601, %v602
    %v604 = vrot.slane %v603, 4
    %v605 = vmax.f32 %v603, %v604
    %v606 = vrot.slane %v605, 2
    %v607 = vmax.f32 %v605, %v606
    %v608 = vrot.slane %v607, 1
    %v609 = vmax.f32 %v607, %v608
    %v610 = vsel %vm554, %v550, -inf
    %v611 = vsel %vm556, %v551, -inf
    %v612 = vmax.f32 %v610, %v611
    %v613 = vrot.slane %v612, 4
    %v614 = vmax.f32 %v612, %v613
    %v615 = vrot.slane %v614, 2
    %v616 = vmax.f32 %v614, %v615
    %v617 = vrot.slane %v616, 1
    %v618 = vmax.f32 %v616, %v617
    %v619 = vsel %vm554, %v552, -inf
    %v620 = vsel %vm556, %v553, -inf
    %v621 = vmax.f32 %v619, %v620
    %v622 = vrot.slane %v621, 4
    %v623 = vmax.f32 %v621, %v622
    %v624 = vrot.slane %v623, 2
    %v625 = vmax.f32 %v623, %v624
    %v626 = vrot.slane %v625, 1
    %v627 = vmax.f32 %v625, %v626
    %v628 = vld [vmem:[#allocation7 + $0x1] sm:$0x1]
    %v629 = vlaneseq
    %v630 = vshrl.u32 %v629, 7
    %v631 = vsub.s32 0, %v630
    %v632 = vrot.slane %v628, %v631
    %634 = vrot.lane.b32.xlu0 %v632, 16
    %v635 = vpop.permute.xlu0 %634
    %v637 = vadd.f32 %v564, %v635
    %v638 = vadd.f32 %v573, %v635
    %v639 = vadd.f32 %v582, %v635
    %v640 = vadd.f32 %v591, %v635
    %v641 = vadd.f32 %v600, %v635
    %v642 = vadd.f32 %v609, %v635
    %v643 = vadd.f32 %v618, %v635
    %v644 = vadd.f32 %v627, %v635
    %v645 = vmax.f32 %v637, 0.0
    %v646 = vmax.f32 %v638, 0.0
    %v647 = vmax.f32 %v639, 0.0
    %v648 = vmax.f32 %v640, 0.0
    %v649 = vmax.f32 %v641, 0.0
    %v650 = vmax.f32 %v642, 0.0
    %v651 = vmax.f32 %v643, 0.0
    %v652 = vmax.f32 %v644, 0.0
    %v653 = vld [vmem:[#allocation8 + $0x8] sm:$0xff]
    %v662 = vrot.slane %v646, 7
    %vm663 = vcmask 1041409
    %v664 = vsel %vm663, %v662, %v645
    %v665 = vrot.slane %v647, 6
    %vm666 = vcmask 1042434
    %v667 = vsel %vm666, %v665, %v664
    %v668 = vrot.slane %v648, 5
    %vm669 = vcmask 1043459
    %v670 = vsel %vm669, %v668, %v667
    %v671 = vrot.slane %v649, 4
    %vm672 = vcmask 1044484
    %v673 = vsel %vm672, %v671, %v670
    %v674 = vrot.slane %v650, 3
    %vm675 = vcmask 1045509
    %v676 = vsel %vm675, %v674, %v673
    %v677 = vrot.slane %v651, 2
    %vm678 = vcmask 1046534
    %v679 = vsel %vm678, %v677, %v676
    %v680 = vrot.slane %v652, 1
    %vm681 = vcmask 1047559
    %v682 = vsel %vm681, %v680, %v679
    %683 = vrot.lane.b32.xlu0 %v682, 112
    %v684 = vpop.permute.xlu0 %683
    %v685 = vsel %vm369, %v684, 0
    %687 = vmatprep.subr.mxu0 0.0
    %688 = vmatpush1.msra.mxu0 %v653
    %689 = vmatprep.subr.mxu0 0.0
    %690 = vmatpush1.msra.mxu0 0.0
    %691 = vmatprep.subr.mxu0 0.0
    %692 = vmatpush1.msra.mxu0 0.0
    %693 = vmatprep.subr.mxu0 0.0
    %694 = vmatpush1.msra.mxu0 0.0
    %695 = vmatprep.subr.mxu0 0.0
    %696 = vmatpush1.msra.mxu0 0.0
    %697 = vmatprep.subr.mxu0 0.0
    %698 = vmatpush1.msra.mxu0 0.0
    %699 = vmatprep.subr.mxu0 0.0
    %700 = vmatpush1.msra.mxu0 0.0
    %701 = vmatprep.subr.mxu0 0.0
    %702 = vmatpush1.msra.mxu0 0.0
    %703 = vmatprep.subr.mxu0 0.0
    %704 = vmatpush1.msra.mxu0 0.0
    %705 = vmatprep.subr.mxu0 0.0
    %706 = vmatpush1.msra.mxu0 0.0
    %707 = vmatprep.subr.mxu0 0.0
    %708 = vmatpush1.msra.mxu0 0.0
    %709 = vmatprep.subr.mxu0 0.0
    %710 = vmatpush1.msra.mxu0 0.0
    %711 = vmatprep.subr.mxu0 0.0
    %712 = vmatpush1.msra.mxu0 0.0
    %713 = vmatprep.subr.mxu0 0.0
    %714 = vmatpush1.msra.mxu0 0.0
    %715 = vmatprep.subr.mxu0 0.0
    %716 = vmatpush1.msra.mxu0 0.0
    %717 = vmatprep.subr.mxu0 0.0
    %718 = vmatpush1.msra.mxu0 0.0
    %719 = vmatprep.subr.mxu0 0.0
    %720 = vmatpush1.msra.mxu0 0.0
    %721 = vmatprep.subr.mxu0 0.0
    %722 = vmatpush1.msra.mxu0 0.0
    %723 = vmatprep.subr.mxu0 0.0
    %724 = vmatpush1.msra.mxu0 0.0
    %725 = vmatprep.subr.mxu0 0.0
    %726 = vmatpush1.msra.mxu0 0.0
    %727 = vmatprep.subr.mxu0 0.0
    %728 = vmatpush1.msra.mxu0 0.0
    %729 = vmatprep.subr.mxu0 0.0
    %730 = vmatpush1.msra.mxu0 0.0
    %731 = vmatprep.subr.mxu0 0.0
    %732 = vmatpush1.msra.mxu0 0.0
    %733 = vmatprep.subr.mxu0 0.0
    %734 = vmatpush1.msra.mxu0 0.0
    %735 = vmatprep.subr.mxu0 0.0
    %736 = vmatpush1.msra.mxu0 0.0
    %737 = vmatprep.subr.mxu0 0.0
    %738 = vmatpush1.msra.mxu0 0.0
    %739 = vmatprep.subr.mxu0 0.0
    %740 = vmatpush1.msra.mxu0 0.0
    %741 = vmatprep.subr.mxu0 0.0
    %742 = vmatpush1.msra.mxu0 0.0
    %743 = vmatprep.subr.mxu0 0.0
    %744 = vmatpush1.msra.mxu0 0.0
    %745 = vmatprep.subr.mxu0 0.0
    %746 = vmatpush1.msra.mxu0 0.0
    %747 = vmatprep.subr.mxu0 0.0
    %748 = vmatpush1.msra.mxu0 0.0
    %749 = vmatprep.subr.mxu0 0.0
    %750 = vmatpush1.msra.mxu0 0.0
    %751 = vmatprep.mubr.f32.mxu0 0.0
    %752 = vmatmul.mubr.f32.gmra.mrb[0].mxu0 %v685
    %v753 = vpop.f32.mrb[0].mxu0
    %v754 = vadd.f32 0.0, %v753
    %v755 = vpop.f32.mrb[0].mxu0
    %756 = vdwg.mxu0
    %v765 = vrot.slane %v457, 7
    %v766 = vsel %vm663, %v765, %v456
    %v767 = vrot.slane %v458, 6
    %v768 = vsel %vm666, %v767, %v766
    %v769 = vrot.slane %v459, 5
    %v770 = vsel %vm669, %v769, %v768
    %v771 = vrot.slane %v460, 4
    %v772 = vsel %vm672, %v771, %v770
    %v773 = vrot.slane %v461, 3
    %v774 = vsel %vm675, %v773, %v772
    %v775 = vrot.slane %v462, 2
    %v776 = vsel %vm678, %v775, %v774
    %v777 = vrot.slane %v463, 1
    %v778 = vsel %vm681, %v777, %v776
    %v779 = vsel %vm369, %v778, 0
    %781 = vmatprep.subr.mxu0 0.0
    %782 = vmatpush1.msra.mxu0 %v464
    %783 = vmatprep.subr.mxu0 0.0
    %784 = vmatpush1.msra.mxu0 0.0
    %785 = vmatprep.subr.mxu0 0.0
    %786 = vmatpush1.msra.mxu0 0.0
    %787 = vmatprep.subr.mxu0 0.0
    %788 = vmatpush1.msra.mxu0 0.0
    %789 = vmatprep.subr.mxu0 0.0
    %790 = vmatpush1.msra.mxu0 0.0
    %791 = vmatprep.subr.mxu0 0.0
    %792 = vmatpush1.msra.mxu0 0.0
    %793 = vmatprep.subr.mxu0 0.0
    %794 = vmatpush1.msra.mxu0 0.0
    %795 = vmatprep.subr.mxu0 0.0
    %796 = vmatpush1.msra.mxu0 0.0
    %797 = vmatprep.subr.mxu0 0.0
    %798 = vmatpush1.msra.mxu0 0.0
    %799 = vmatprep.subr.mxu0 0.0
    %800 = vmatpush1.msra.mxu0 0.0
    %801 = vmatprep.subr.mxu0 0.0
    %802 = vmatpush1.msra.mxu0 0.0
    %803 = vmatprep.subr.mxu0 0.0
    %804 = vmatpush1.msra.mxu0 0.0
    %805 = vmatprep.subr.mxu0 0.0
    %806 = vmatpush1.msra.mxu0 0.0
    %807 = vmatprep.subr.mxu0 0.0
    %808 = vmatpush1.msra.mxu0 0.0
    %809 = vmatprep.subr.mxu0 0.0
    %810 = vmatpush1.msra.mxu0 0.0
    %811 = vmatprep.subr.mxu0 0.0
    %812 = vmatpush1.msra.mxu0 0.0
    %813 = vmatprep.subr.mxu0 0.0
    %814 = vmatpush1.msra.mxu0 0.0
    %815 = vmatprep.subr.mxu0 0.0
    %816 = vmatpush1.msra.mxu0 0.0
    %817 = vmatprep.subr.mxu0 0.0
    %818 = vmatpush1.msra.mxu0 0.0
    %819 = vmatprep.subr.mxu0 0.0
    %820 = vmatpush1.msra.mxu0 0.0
    %821 = vmatprep.subr.mxu0 0.0
    %822 = vmatpush1.msra.mxu0 0.0
    %823 = vmatprep.subr.mxu0 0.0
    %824 = vmatpush1.msra.mxu0 0.0
    %825 = vmatprep.subr.mxu0 0.0
    %826 = vmatpush1.msra.mxu0 0.0
    %827 = vmatprep.subr.mxu0 0.0
    %828 = vmatpush1.msra.mxu0 0.0
    %829 = vmatprep.subr.mxu0 0.0
    %830 = vmatpush1.msra.mxu0 0.0
    %831 = vmatprep.subr.mxu0 0.0
    %832 = vmatpush1.msra.mxu0 0.0
    %833 = vmatprep.subr.mxu0 0.0
    %834 = vmatpush1.msra.mxu0 0.0
    %835 = vmatprep.subr.mxu0 0.0
    %836 = vmatpush1.msra.mxu0 0.0
    %837 = vmatprep.subr.mxu0 0.0
    %838 = vmatpush1.msra.mxu0 0.0
    %839 = vmatprep.subr.mxu0 0.0
    %840 = vmatpush1.msra.mxu0 0.0
    %841 = vmatprep.subr.mxu0 0.0
    %842 = vmatpush1.msra.mxu0 0.0
    %843 = vmatprep.subr.mxu0 0.0
    %844 = vmatpush1.msra.mxu0 0.0
    %845 = vmatprep.mubr.f32.mxu0 0.0
    %846 = vmatmul.mubr.f32.gmra.mrb[0].mxu0 %v779
    %v847 = vpop.f32.mrb[0].mxu0
    %v848 = vadd.f32 %v754, %v847
    %v849 = vpop.f32.mrb[0].mxu0
    %850 = vdwg.mxu0
    %vm851 = vcmask 1044480
    %v852 = vrot.slane %v186, 3
    %v853 = vrot.slane %v191, 3
    %v854 = vsel %vm851, %v852, %v853
    %v855 = vrot.slane %v196, 3
    %v856 = vrot.slane %v201, 3
    %v857 = vsel %vm851, %v855, %v856
    %v858 = vrot.slane %v206, 3
    %v859 = vrot.slane %v211, 3
    %v860 = vsel %vm851, %v858, %v859
    %v861 = vrot.slane %v216, 3
    %v862 = vrot.slane %v221, 3
    %v863 = vsel %vm851, %v861, %v862
    %v864 = vrot.slane %v226, 3
    %v865 = vrot.slane %v231, 3
    %v866 = vsel %vm851, %v864, %v865
    %v867 = vrot.slane %v236, 3
    %v868 = vrot.slane %v241, 3
    %v869 = vsel %vm851, %v867, %v868
    %v870 = vrot.slane %v246, 3
    %v871 = vrot.slane %v251, 3
    %v872 = vsel %vm851, %v870, %v871
    %v873 = vrot.slane %v256, 3
    %v874 = vrot.slane %v261, 3
    %v875 = vsel %vm851, %v873, %v874
    %876 = vrot.lane.b32.xlu0 %v854, 104
    %v877 = vpop.permute.xlu0 %876
    %878 = vrot.lane.b32.xlu0 %v853, 104
    %v879 = vpop.permute.xlu0 %878
    %880 = vrot.lane.b32.xlu0 %v857, 104
    %v881 = vpop.permute.xlu0 %880
    %882 = vrot.lane.b32.xlu0 %v856, 104
    %v883 = vpop.permute.xlu0 %882
    %884 = vrot.lane.b32.xlu0 %v860, 104
    %v885 = vpop.permute.xlu0 %884
    %886 = vrot.lane.b32.xlu0 %v859, 104
    %v887 = vpop.permute.xlu0 %886
    %888 = vrot.lane.b32.xlu0 %v863, 104
    %v889 = vpop.permute.xlu0 %888
    %890 = vrot.lane.b32.xlu0 %v862, 104
    %v891 = vpop.permute.xlu0 %890
    %892 = vrot.lane.b32.xlu0 %v866, 104
    %v893 = vpop.permute.xlu0 %892
    %894 = vrot.lane.b32.xlu0 %v865, 104
    %v895 = vpop.permute.xlu0 %894
    %896 = vrot.lane.b32.xlu0 %v869, 104
    %v897 = vpop.permute.xlu0 %896
    %898 = vrot.lane.b32.xlu0 %v868, 104
    %v899 = vpop.permute.xlu0 %898
    %900 = vrot.lane.b32.xlu0 %v872, 104
    %v901 = vpop.permute.xlu0 %900
    %902 = vrot.lane.b32.xlu0 %v871, 104
    %v903 = vpop.permute.xlu0 %902
    %904 = vrot.lane.b32.xlu0 %v875, 104
    %v905 = vpop.permute.xlu0 %904
    %906 = vrot.lane.b32.xlu0 %v874, 104
    %v907 = vpop.permute.xlu0 %906
    %v924 = vadd.f32 %v538, %v877
    %v925 = vadd.f32 %v539, %v879
    %v926 = vadd.f32 %v540, %v881
    %v927 = vadd.f32 %v541, %v883
    %v928 = vadd.f32 %v542, %v885
    %v929 = vadd.f32 %v543, %v887
    %v930 = vadd.f32 %v544, %v889
    %v931 = vadd.f32 %v545, %v891
    %v932 = vadd.f32 %v546, %v893
    %v933 = vadd.f32 %v547, %v895
    %v934 = vadd.f32 %v548, %v897
    %v935 = vadd.f32 %v549, %v899
    %v936 = vadd.f32 %v550, %v901
    %v937 = vadd.f32 %v551, %v903
    %v938 = vadd.f32 %v552, %v905
    %v939 = vadd.f32 %v553, %v907
    %vm940 = vcmask 392512
    %v941 = vsel %vm940, %v924, -inf
    %vm942 = vcmask 389440
    %v943 = vsel %vm942, %v925, -inf
    %v944 = vmax.f32 %v941, %v943
    %v945 = vrot.slane %v944, 4
    %v946 = vmax.f32 %v944, %v945
    %v947 = vrot.slane %v946, 2
    %v948 = vmax.f32 %v946, %v947
    %v949 = vrot.slane %v948, 1
    %v950 = vmax.f32 %v948, %v949
    %v951 = vsel %vm940, %v926, -inf
    %v952 = vsel %vm942, %v927, -inf
    %v953 = vmax.f32 %v951, %v952
    %v954 = vrot.slane %v953, 4
    %v955 = vmax.f32 %v953, %v954
    %v956 = vrot.slane %v955, 2
    %v957 = vmax.f32 %v955, %v956
    %v958 = vrot.slane %v957, 1
    %v959 = vmax.f32 %v957, %v958
    %v960 = vsel %vm940, %v928, -inf
    %v961 = vsel %vm942, %v929, -inf
    %v962 = vmax.f32 %v960, %v961
    %v963 = vrot.slane %v962, 4
    %v964 = vmax.f32 %v962, %v963
    %v965 = vrot.slane %v964, 2
    %v966 = vmax.f32 %v964, %v965
    %v967 = vrot.slane %v966, 1
    %v968 = vmax.f32 %v966, %v967
    %v969 = vsel %vm940, %v930, -inf
    %v970 = vsel %vm942, %v931, -inf
    %v971 = vmax.f32 %v969, %v970
    %v972 = vrot.slane %v971, 4
    %v973 = vmax.f32 %v971, %v972
    %v974 = vrot.slane %v973, 2
    %v975 = vmax.f32 %v973, %v974
    %v976 = vrot.slane %v975, 1
    %v977 = vmax.f32 %v975, %v976
    %v978 = vsel %vm940, %v932, -inf
    %v979 = vsel %vm942, %v933, -inf
    %v980 = vmax.f32 %v978, %v979
    %v981 = vrot.slane %v980, 4
    %v982 = vmax.f32 %v980, %v981
    %v983 = vrot.slane %v982, 2
    %v984 = vmax.f32 %v982, %v983
    %v985 = vrot.slane %v984, 1
    %v986 = vmax.f32 %v984, %v985
    %v987 = vsel %vm940, %v934, -inf
    %v988 = vsel %vm942, %v935, -inf
    %v989 = vmax.f32 %v987, %v988
    %v990 = vrot.slane %v989, 4
    %v991 = vmax.f32 %v989, %v990
    %v992 = vrot.slane %v991, 2
    %v993 = vmax.f32 %v991, %v992
    %v994 = vrot.slane %v993, 1
    %v995 = vmax.f32 %v993, %v994
    %v996 = vsel %vm940, %v936, -inf
    %v997 = vsel %vm942, %v937, -inf
    %v998 = vmax.f32 %v996, %v997
    %v999 = vrot.slane %v998, 4
    %v1000 = vmax.f32 %v998, %v999
    %v1001 = vrot.slane %v1000, 2
    %v1002 = vmax.f32 %v1000, %v1001
    %v1003 = vrot.slane %v1002, 1
    %v1004 = vmax.f32 %v1002, %v1003
    %v1005 = vsel %vm940, %v938, -inf
    %v1006 = vsel %vm942, %v939, -inf
    %v1007 = vmax.f32 %v1005, %v1006
    %v1008 = vrot.slane %v1007, 4
    %v1009 = vmax.f32 %v1007, %v1008
    %v1010 = vrot.slane %v1009, 2
    %v1011 = vmax.f32 %v1009, %v1010
    %v1012 = vrot.slane %v1011, 1
    %v1013 = vmax.f32 %v1011, %v1012
    %v1014 = vld [vmem:[#allocation7 + $0x2] sm:$0x1]
    %v1015 = vlaneseq
    %v1016 = vshrl.u32 %v1015, 7
    %v1017 = vsub.s32 0, %v1016
    %v1018 = vrot.slane %v1014, %v1017
    %1020 = vrot.lane.b32.xlu0 %v1018, 40
    %v1021 = vpop.permute.xlu0 %1020
    %v1023 = vadd.f32 %v950, %v1021
    %v1024 = vadd.f32 %v959, %v1021
    %v1025 = vadd.f32 %v968, %v1021
    %v1026 = vadd.f32 %v977, %v1021
    %v1027 = vadd.f32 %v986, %v1021
    %v1028 = vadd.f32 %v995, %v1021
    %v1029 = vadd.f32 %v1004, %v1021
    %v1030 = vadd.f32 %v1013, %v1021
    %v1031 = vmax.f32 %v1023, 0.0
    %v1032 = vmax.f32 %v1024, 0.0
    %v1033 = vmax.f32 %v1025, 0.0
    %v1034 = vmax.f32 %v1026, 0.0
    %v1035 = vmax.f32 %v1027, 0.0
    %v1036 = vmax.f32 %v1028, 0.0
    %v1037 = vmax.f32 %v1029, 0.0
    %v1038 = vmax.f32 %v1030, 0.0
    %v1039 = vld [vmem:[#allocation8 + $0x10] sm:$0xff]
    %v1048 = vrot.slane %v1032, 7
    %v1049 = vsel %vm663, %v1048, %v1031
    %v1050 = vrot.slane %v1033, 6
    %v1051 = vsel %vm666, %v1050, %v1049
    %v1052 = vrot.slane %v1034, 5
    %v1053 = vsel %vm669, %v1052, %v1051
    %v1054 = vrot.slane %v1035, 4
    %v1055 = vsel %vm672, %v1054, %v1053
    %v1056 = vrot.slane %v1036, 3
    %v1057 = vsel %vm675, %v1056, %v1055
    %v1058 = vrot.slane %v1037, 2
    %v1059 = vsel %vm678, %v1058, %v1057
    %v1060 = vrot.slane %v1038, 1
    %v1061 = vsel %vm681, %v1060, %v1059
    %1062 = vrot.lane.b32.xlu0 %v1061, 88
    %v1063 = vpop.permute.xlu0 %1062
    %v1064 = vsel %vm369, %v1063, 0
    %1066 = vmatprep.subr.mxu0 0.0
    %1067 = vmatpush1.msra.mxu0 %v1039
    %1068 = vmatprep.subr.mxu0 0.0
    %1069 = vmatpush1.msra.mxu0 0.0
    %1070 = vmatprep.subr.mxu0 0.0
    %1071 = vmatpush1.msra.mxu0 0.0
    %1072 = vmatprep.subr.mxu0 0.0
    %1073 = vmatpush1.msra.mxu0 0.0
    %1074 = vmatprep.subr.mxu0 0.0
    %1075 = vmatpush1.msra.mxu0 0.0
    %1076 = vmatprep.subr.mxu0 0.0
    %1077 = vmatpush1.msra.mxu0 0.0
    %1078 = vmatprep.subr.mxu0 0.0
    %1079 = vmatpush1.msra.mxu0 0.0
    %1080 = vmatprep.subr.mxu0 0.0
    %1081 = vmatpush1.msra.mxu0 0.0
    %1082 = vmatprep.subr.mxu0 0.0
    %1083 = vmatpush1.msra.mxu0 0.0
    %1084 = vmatprep.subr.mxu0 0.0
    %1085 = vmatpush1.msra.mxu0 0.0
    %1086 = vmatprep.subr.mxu0 0.0
    %1087 = vmatpush1.msra.mxu0 0.0
    %1088 = vmatprep.subr.mxu0 0.0
    %1089 = vmatpush1.msra.mxu0 0.0
    %1090 = vmatprep.subr.mxu0 0.0
    %1091 = vmatpush1.msra.mxu0 0.0
    %1092 = vmatprep.subr.mxu0 0.0
    %1093 = vmatpush1.msra.mxu0 0.0
    %1094 = vmatprep.subr.mxu0 0.0
    %1095 = vmatpush1.msra.mxu0 0.0
    %1096 = vmatprep.subr.mxu0 0.0
    %1097 = vmatpush1.msra.mxu0 0.0
    %1098 = vmatprep.subr.mxu0 0.0
    %1099 = vmatpush1.msra.mxu0 0.0
    %1100 = vmatprep.subr.mxu0 0.0
    %1101 = vmatpush1.msra.mxu0 0.0
    %1102 = vmatprep.subr.mxu0 0.0
    %1103 = vmatpush1.msra.mxu0 0.0
    %1104 = vmatprep.subr.mxu0 0.0
    %1105 = vmatpush1.msra.mxu0 0.0
    %1106 = vmatprep.subr.mxu0 0.0
    %1107 = vmatpush1.msra.mxu0 0.0
    %1108 = vmatprep.subr.mxu0 0.0
    %1109 = vmatpush1.msra.mxu0 0.0
    %1110 = vmatprep.subr.mxu0 0.0
    %1111 = vmatpush1.msra.mxu0 0.0
    %1112 = vmatprep.subr.mxu0 0.0
    %1113 = vmatpush1.msra.mxu0 0.0
    %1114 = vmatprep.subr.mxu0 0.0
    %1115 = vmatpush1.msra.mxu0 0.0
    %1116 = vmatprep.subr.mxu0 0.0
    %1117 = vmatpush1.msra.mxu0 0.0
    %1118 = vmatprep.subr.mxu0 0.0
    %1119 = vmatpush1.msra.mxu0 0.0
    %1120 = vmatprep.subr.mxu0 0.0
    %1121 = vmatpush1.msra.mxu0 0.0
    %1122 = vmatprep.subr.mxu0 0.0
    %1123 = vmatpush1.msra.mxu0 0.0
    %1124 = vmatprep.subr.mxu0 0.0
    %1125 = vmatpush1.msra.mxu0 0.0
    %1126 = vmatprep.subr.mxu0 0.0
    %1127 = vmatpush1.msra.mxu0 0.0
    %1128 = vmatprep.subr.mxu0 0.0
    %1129 = vmatpush1.msra.mxu0 0.0
    %1130 = vmatprep.mubr.f32.mxu0 0.0
    %1131 = vmatmul.mubr.f32.gmra.mrb[0].mxu0 %v1064
    %v1132 = vpop.f32.mrb[0].mxu0
    %v1133 = vadd.f32 0.0, %v1132
    %v1134 = vpop.f32.mrb[0].mxu0
    %1135 = vdwg.mxu0
    %v1136 = vadd.f32 %v848, %v1133
    %v1137 = vld [vmem:[#allocation7 + $0x3] sm:$0x1]
    %v1138 = vlaneseq
    %v1139 = vshrl.u32 %v1138, 7
    %v1140 = vsub.s32 0, %v1139
    %v1141 = vrot.slane %v1137, %v1140
    %v1142 = vadd.f32 %v1136, %v1141
    %v1143 = vmax.f32 %v1142, 0.0
    %v1144 = vld [vmem:[#allocation10] sm:$0xff]
    %v1145 = vld [vmem:[#allocation10 + $0x8] sm:$0xff]
    %v1146 = vld [vmem:[#allocation10 + $0x10] sm:$0xff]
    %v1147 = vld [vmem:[#allocation10 + $0x18] sm:$0xff]
    %v1148 = vld [vmem:[#allocation10 + $0x20] sm:$0xff]
    %v1149 = vld [vmem:[#allocation10 + $0x28] sm:$0xff]
    %v1150 = vld [vmem:[#allocation10 + $0x30] sm:$0xff]
    %v1151 = vld [vmem:[#allocation10 + $0x38] sm:$0xff]
    %v1152 = vld [vmem:[#allocation10 + $0x40] sm:$0xff]
    %v1153 = vld [vmem:[#allocation10 + $0x48] sm:$0xff]
    %v1154 = vld [vmem:[#allocation10 + $0x50] sm:$0xff]
    %v1155 = vld [vmem:[#allocation10 + $0x58] sm:$0xff]
    %v1156 = vld [vmem:[#allocation10 + $0x60] sm:$0xff]
    %v1157 = vld [vmem:[#allocation10 + $0x68] sm:$0xff]
    %v1158 = vld [vmem:[#allocation10 + $0x70] sm:$0xff]
    %v1159 = vld [vmem:[#allocation10 + $0x78] sm:$0xff]
    %v1160 = vld [vmem:[#allocation7 + $0x4] sm:$0x1]
    %v1161 = vlaneseq
    %v1162 = vshrl.u32 %v1161, 7
    %v1163 = vsub.s32 0, %v1162
    %v1164 = vrot.slane %v1160, %v1163
    %1165 = vmatprep.subr.mxu0 0.0
    %1166 = vmatpush1.msra.mxu0 %v1144
    %1167 = vmatprep.subr.mxu0 0.0
    %1168 = vmatpush1.msra.mxu0 %v1145
    %1169 = vmatprep.subr.mxu0 0.0
    %1170 = vmatpush1.msra.mxu0 %v1146
    %1171 = vmatprep.subr.mxu0 0.0
    %1172 = vmatpush1.msra.mxu0 %v1147
    %1173 = vmatprep.subr.mxu0 0.0
    %1174 = vmatpush1.msra.mxu0 %v1148
    %1175 = vmatprep.subr.mxu0 0.0
    %1176 = vmatpush1.msra.mxu0 %v1149
    %1177 = vmatprep.subr.mxu0 0.0
    %1178 = vmatpush1.msra.mxu0 %v1150
    %1179 = vmatprep.subr.mxu0 0.0
    %1180 = vmatpush1.msra.mxu0 %v1151
    %1181 = vmatprep.subr.mxu0 0.0
    %1182 = vmatpush1.msra.mxu0 %v1152
    %1183 = vmatprep.subr.mxu0 0.0
    %1184 = vmatpush1.msra.mxu0 %v1153
    %1185 = vmatprep.subr.mxu0 0.0
    %1186 = vmatpush1.msra.mxu0 %v1154
    %1187 = vmatprep.subr.mxu0 0.0
    %1188 = vmatpush1.msra.mxu0 %v1155
    %1189 = vmatprep.subr.mxu0 0.0
    %1190 = vmatpush1.msra.mxu0 %v1156
    %1191 = vmatprep.subr.mxu0 0.0
    %1192 = vmatpush1.msra.mxu0 %v1157
    %1193 = vmatprep.subr.mxu0 0.0
    %1194 = vmatpush1.msra.mxu0 %v1158
    %1195 = vmatprep.subr.mxu0 0.0
    %1196 = vmatpush1.msra.mxu0 %v1159
    %1197 = vmatprep.subr.mxu0 0.0
    %1198 = vmatpush1.msra.mxu0 0.0
    %1199 = vmatprep.subr.mxu0 0.0
    %1200 = vmatpush1.msra.mxu0 0.0
    %1201 = vmatprep.subr.mxu0 0.0
    %1202 = vmatpush1.msra.mxu0 0.0
    %1203 = vmatprep.subr.mxu0 0.0
    %1204 = vmatpush1.msra.mxu0 0.0
    %1205 = vmatprep.subr.mxu0 0.0
    %1206 = vmatpush1.msra.mxu0 0.0
    %1207 = vmatprep.subr.mxu0 0.0
    %1208 = vmatpush1.msra.mxu0 0.0
    %1209 = vmatprep.subr.mxu0 0.0
    %1210 = vmatpush1.msra.mxu0 0.0
    %1211 = vmatprep.subr.mxu0 0.0
    %1212 = vmatpush1.msra.mxu0 0.0
    %1213 = vmatprep.subr.mxu0 0.0
    %1214 = vmatpush1.msra.mxu0 0.0
    %1215 = vmatprep.subr.mxu0 0.0
    %1216 = vmatpush1.msra.mxu0 0.0
    %1217 = vmatprep.subr.mxu0 0.0
    %1218 = vmatpush1.msra.mxu0 0.0
    %1219 = vmatprep.subr.mxu0 0.0
    %1220 = vmatpush1.msra.mxu0 0.0
    %1221 = vmatprep.subr.mxu0 0.0
    %1222 = vmatpush1.msra.mxu0 0.0
    %1223 = vmatprep.subr.mxu0 0.0
    %1224 = vmatpush1.msra.mxu0 0.0
    %1225 = vmatprep.subr.mxu0 0.0
    %1226 = vmatpush1.msra.mxu0 0.0
    %1227 = vmatprep.subr.mxu0 0.0
    %1228 = vmatpush1.msra.mxu0 0.0
    %1229 = vmatprep.mubr.f32.mxu0 0.0
    %1230 = vmatmul.mubr.f32.gmra.mrb[0].mxu0 %v1143
    %v1231 = vpop.f32.mrb[0].mxu0
    %v1232 = vadd.f32 %v1164, %v1231
    %v1233 = vpop.f32.mrb[0].mxu0
    %1234 = vdwg.mxu0
    %1235 = vst [vmem:[#allocation11] sm:$0xff] %v1232
    // Predicated region
    $region42: #{tpu_custom_call.1} parent=1 // pred_check
      _
    $region43: #{tpu_custom_call.1} parent=1 // pred_check_branch
      %1237 = sbr.rel (0) target = $region45
    $region44: #{tpu_custom_call.1} parent=1 // pred_region
      %s1239 = ssub.s32 128, 128
      %1240 = vsyncadd [#allocation4], %s1239
      %s1242 = sshll.u32 [#allocation11], 4
      %s1243 = int_to_ptr.vmem [resolvable:$true] %s1242
      %1245 = dma.vmem_to_hbm [thread:$0]  %s1243, 128, %s5, [#allocation4]
    $region45: #{tpu_custom_call.1} parent=1 // pred_fallthru
      _
    // Predicated region
    $region46: #{tpu_custom_call.1} parent=1 // pred_check
      _
    $region47: #{tpu_custom_call.1} parent=1 // pred_check_branch
      %1247 = sbr.rel (0) target = $region49
    $region48: #{tpu_custom_call.1} parent=1 // pred_region
      %1248 = dma.done [#allocation4], 128
    $region49: #{tpu_custom_call.1} parent=1 // pred_fallthru
      _
    %1249 = vsyncpa [#allocation3], 1
    %1250 = vsyncpa [#allocation6], 1
    %1251 = vsyncpa [#allocation9], 1
    %1252 = vsyncpa [#allocation4], 1

</llo_original>
